<compile_context>
chip_gen: v7x
topology: tpu7x:2x2x1
jax: 0.10.0
libtpu: 0.0.40
codegen_flags: <defaults>
</compile_context>

<pallas_src>
import jax
import jax.numpy as jnp
from jax import lax
from jax.experimental import pallas as pl
from jax.experimental.pallas import tpu as pltpu


def nsp_head_kernel(x_ref, w_ref, b_ref, o_ref):
    # x_ref: [TILE_B, H] (streamed); w_ref: [2, H] (resident, PyTorch layout);
    # b_ref: [1, 2] f32 (resident); o_ref: [TILE_B, 2].
    acc = lax.dot_general(
        x_ref[...], w_ref[...],
        dimension_numbers=(((1,), (1,)), ((), ())),   # contract H with H == x @ W^T
        preferred_element_type=jnp.float32,           # f32 MXU accumulate
    )
    o_ref[...] = (acc + b_ref[...]).astype(o_ref.dtype)


def _generation_budgets():
    """Return (vmem_limit_bytes, streaming_budget_bytes) tuned per TPU generation."""
    mib = 1024 * 1024
    vmem_phys = 128 * mib
    kind = ""
    try:
        vmem_phys = int(pltpu.get_tpu_info().vmem_capacity_bytes)
    except Exception:
        pass
    try:
        kind = jax.devices()[0].device_kind.lower()
    except Exception:
        pass
    if vmem_phys <= 80 * mib:
        # v7x: 64 MiB per TC, ~3.2 TB/s HBM -> biggest tiles of any generation,
        # but cap total well under physical VMEM (~25% headroom for the compiler).
        return 48 * mib, 40 * mib
    if "v5" in kind:
        # v5e: ~820 GB/s HBM; ~8 MiB x tiles already make the ~0.35us/step cost <4%.
        # Scoped default is only 16 MiB, so keep the explicit limit override.
        return 32 * mib, 20 * mib
    # v6e (and other 128 MiB-VMEM parts): ~1.4 TB/s HBM -> ~24 MiB x tiles.
    return 64 * mib, 56 * mib


def _pick_tiling(B, H, x_dtype, out_dtype):
    """Pick the batch tile: as big as the generation's VMEM budget allows
    (amortizes the ~0.35 us/step grid overhead against HBM-bound DMA), rounded
    down to the dtype-native sublane pack."""
    x_isz = jnp.dtype(x_dtype).itemsize
    o_isz = jnp.dtype(out_dtype).itemsize
    vmem_limit, streaming_budget = _generation_budgets()
    # Per batch row, double-buffered: x row (H elems) + lane-padded (>=128) out row.
    per_row = 2 * (H * x_isz + 128 * o_isz)
    # Leave ~1 MiB for the resident [2, H] weight, bias and internal scratch.
    max_rows = max((streaming_budget - (1 << 20)) // per_row, 0)
    # Native sublane pack: f32 -> 8, bf16 -> 16, int8/fp8 -> 32.
    sublane = max(8, 32 // x_isz)
    if B <= max_rows or max_rows < sublane:
        return B, vmem_limit                      # single full-extent block (layout-legal)
    return (max_rows // sublane) * sublane, vmem_limit


def _batch_axis_semantics(num_tiles):
    """Use CORE_PARALLEL only when a multi-TensorCore chip is positively detected
    (v7x); plain 'parallel' vs 'arbitrary' has no measured codegen impact on
    single-TC parts."""
    n_tc = 1
    try:
        info = pltpu.get_tpu_info()
        for attr in ("tensorcores_per_chip", "tensor_cores_per_chip", "num_tensorcores"):
            val = getattr(info, attr, None)
            if isinstance(val, int) and val > 0:
                n_tc = val
                break
    except Exception:
        n_tc = 1
    if n_tc > 1 and num_tiles >= n_tc:
        return (pltpu.CORE_PARALLEL,)
    return ("parallel",)


def bert_only_nsp_head(pooled_output, weight, bias):
    """pooled_output: [B, H]; weight: [2, H] (PyTorch nn.Linear layout); bias: [2]."""
    B, H = pooled_output.shape
    assert weight.shape == (2, H)
    if weight.dtype != pooled_output.dtype:
        weight = weight.astype(pooled_output.dtype)   # no-op in the common same-dtype case
    b2d = bias.reshape(1, 2).astype(jnp.float32)      # broadcast over batch in-kernel

    tile_b, vmem_limit = _pick_tiling(B, H, pooled_output.dtype, pooled_output.dtype)
    num_tiles = pl.cdiv(B, tile_b)

    x_isz = jnp.dtype(pooled_output.dtype).itemsize
    cost = pl.CostEstimate(
        flops=2 * B * H * 2,
        transcendentals=0,
        bytes_accessed=(B * H * x_isz          # pooled_output read
                        + 2 * H * x_isz        # weight read
                        + 2 * 4                # f32 bias read
                        + B * 2 * x_isz),      # logits write
    )

    return pl.pallas_call(
        nsp_head_kernel,
        out_shape=jax.ShapeDtypeStruct((B, 2), pooled_output.dtype),
        grid=(num_tiles,),
        in_specs=[
            pl.BlockSpec((tile_b, H), lambda i: (i, 0)),   # streamed batch tiles of x
            pl.BlockSpec((2, H), lambda i: (0, 0)),        # weight resident (PyTorch layout)
            pl.BlockSpec((1, 2), lambda i: (0, 0)),        # bias resident
        ],
        out_specs=pl.BlockSpec((tile_b, 2), lambda i: (i, 0)),
        compiler_params=pltpu.CompilerParams(
            dimension_semantics=_batch_axis_semantics(num_tiles),
            vmem_limit_bytes=vmem_limit,
        ),
        cost_estimate=cost,
    )(pooled_output, weight, b2d)


if __name__ == "__main__":
    # Small shapes consistent with the module: batch=8, hidden=32, out_features=2.
    B, H = 8, 32
    key = jax.random.PRNGKey(0)
    k_x, k_w, k_b = jax.random.split(key, 3)

    pooled_output = jax.random.normal(k_x, (B, H), dtype=jnp.float32)
    # Deterministic synthetic parameters mirroring nn.Linear(H, 2) shapes.
    weight = jax.random.normal(k_w, (2, H), dtype=jnp.float32) * 0.02
    bias = jax.random.normal(k_b, (2,), dtype=jnp.float32) * 0.02

    out = jax.block_until_ready(bert_only_nsp_head(pooled_output, weight, bias))

    # Reference check in plain JAX (PyTorch semantics: x @ W^T + b).
    ref = pooled_output @ weight.T + bias
    assert out.shape == (B, 2)
    assert jnp.allclose(out, ref, atol=1e-5, rtol=1e-5)
    print("KERNEL_OK")
</pallas_src>

<mosaic_0001>
module attributes {stable_mosaic.version = 11 : i64} {
  func.func @nsp_head_kernel(%arg0: i32, %arg1: memref<8x32xf32, #tpu.memory_space<vmem>>, %arg2: memref<2x32xf32, #tpu.memory_space<vmem>>, %arg3: memref<1x2xf32, #tpu.memory_space<vmem>>, %arg4: memref<8x2xf32, #tpu.memory_space<vmem>>) attributes {dimension_semantics = [#tpu.dimension_semantics<parallel>], iteration_bounds = array<i64: 1>, scalar_prefetch = 0 : i64, scratch_operands = 0 : i64, tpu.core_type = #tpu.core_type<tc>, window_params = [{transform_indices = @transform_0, window_bounds = array<i64: 8, 32>}, {pipeline_mode = #tpu.pipeline_mode<synchronous>, transform_indices = @transform_1, window_bounds = array<i64: 2, 32>}, {pipeline_mode = #tpu.pipeline_mode<synchronous>, transform_indices = @transform_2, window_bounds = array<i64: 1, 2>}, {transform_indices = @transform_3, window_bounds = array<i64: 8, 2>}]} {
    %c0 = arith.constant 0 : index
    %c0_0 = arith.constant 0 : index
    %0 = vector.load %arg1[%c0, %c0_0] : memref<8x32xf32, #tpu.memory_space<vmem>>, vector<8x32xf32>
    %c0_1 = arith.constant 0 : index
    %c0_2 = arith.constant 0 : index
    %1 = vector.load %arg2[%c0_1, %c0_2] : memref<2x32xf32, #tpu.memory_space<vmem>>, vector<2x32xf32>
    %cst = arith.constant dense<0.000000e+00> : vector<8x2xf32>
    %2 = tpu.matmul %0, %1, %cst {dimension_numbers = #tpu.dot_dimension_numbers<[1], [1], [0], [0], [0, 0, 1, 0], [], []>} : vector<8x32xf32>, vector<2x32xf32>, vector<8x2xf32> -> vector<8x2xf32>
    %c0_3 = arith.constant 0 : index
    %c0_4 = arith.constant 0 : index
    %3 = vector.load %arg3[%c0_3, %c0_4] : memref<1x2xf32, #tpu.memory_space<vmem>>, vector<1x2xf32>
    %4 = vector.broadcast %3 : vector<1x2xf32> to vector<8x2xf32>
    %5 = arith.addf %2, %4 : vector<8x2xf32>
    %c0_5 = arith.constant 0 : index
    %c0_6 = arith.constant 0 : index
    %6 = vector.load %arg4[%c0_5, %c0_6] : memref<8x2xf32, #tpu.memory_space<vmem>>, vector<8x2xf32>
    tpu.vector_store %arg4[%c0_5, %c0_6], %5 {strides = array<i32>} : memref<8x2xf32, #tpu.memory_space<vmem>>, vector<8x2xf32>,
    return
  }
  func.func @transform_0(%arg0: i32) -> (i32, i32) {
    %c0_i32 = arith.constant 0 : i32
    %c0_i32_0 = arith.constant 0 : i32
    return %arg0, %c0_i32 : i32, i32
  }
  func.func @transform_1(%arg0: i32) -> (i32, i32) {
    %c0_i32 = arith.constant 0 : i32
    %c0_i32_0 = arith.constant 0 : i32
    %c0_i32_1 = arith.constant 0 : i32
    return %c0_i32, %c0_i32_0 : i32, i32
  }
  func.func @transform_2(%arg0: i32) -> (i32, i32) {
    %c0_i32 = arith.constant 0 : i32
    %c0_i32_0 = arith.constant 0 : i32
    %c0_i32_1 = arith.constant 0 : i32
    return %c0_i32, %c0_i32_0 : i32, i32
  }
  func.func @transform_3(%arg0: i32) -> (i32, i32) {
    %c0_i32 = arith.constant 0 : i32
    %c0_i32_0 = arith.constant 0 : i32
    return %arg0, %c0_i32 : i32, i32
  }
}

</mosaic_0001>

<llo_original>
// kernel: tpu_custom_call.1
$region0: #{tpu_custom_call.1}
  #allocation0 [shape = 'u32[]', space=smem, size = 0x4, offset = 0x4, fixed_abs, tag = 'smem constant byte address 0x4 - core index']
  #allocation1 [shape = 'u32[144,128]{1,0:T(1,128)}', space=vmem, size = 0x12000, scoped, tag = 'internal scratch']
  %s0 = inlined_call_operand.hbm [shape: f32[8,32], index: 0, kind: input, shape index: {}]
  %s1 = inlined_call_operand.hbm [shape: f32[2,32], index: 1, kind: input, shape index: {}]
  %s2 = inlined_call_operand.hbm [shape: f32[1,2], index: 2, kind: input, shape index: {}]
  %s3 = inlined_call_operand.hbm [shape: f32[8,2], index: 3, kind: output, shape index: {}]
  %s4 = sld [smem:[#allocation0]]
  $region34: #{tpu_custom_call.1} parent=0
    _
  %s6 = ssub.s32 1, %s4
  %s7 = scalar_select 0, %s6, %s4
  $region1: #{tpu_custom_call.1} parent=0
    #allocation2 [shape = 'u8[4096]{0}', space=vmem, size = 0x1000, scoped, tag = 'input window, operand 0, single buffered']
    #allocation3 [shape = 's32[1]{0}', space=sflag, size = 0x4, scoped, tag = 'scoped memory for tpu_custom_call.1']
    #allocation4 [shape = 's32[1]{0}', space=sflag, size = 0x4, scoped, tag = 'scoped memory for tpu_custom_call.1']
    #allocation5 [shape = 'u8[1024]{0}', space=vmem, size = 0x400, scoped, tag = 'input window, operand 1, single buffered']
    #allocation6 [shape = 's32[1]{0}', space=sflag, size = 0x4, scoped, tag = 'scoped memory for tpu_custom_call.1']
    #allocation7 [shape = 'u8[512]{0}', space=vmem, size = 0x400, scoped, tag = 'input window, operand 2, single buffered']
    #allocation8 [shape = 'u8[4096]{0}', space=vmem, size = 0x1000, scoped, tag = 'output window, operand 0, single buffered']
    %8 = vsyncpa [#allocation3], 0
    %9 = vsyncpa [#allocation6], 0
    %10 = vsyncpa [#allocation4], 0
    // Predicated region
    $region2: #{tpu_custom_call.1} parent=1 // pred_check
      _
    $region3: #{tpu_custom_call.1} parent=1 // pred_check_branch
      %12 = sbr.rel (0) target = $region5
    $region4: #{tpu_custom_call.1} parent=1 // pred_region
      %s14 = ssub.s32 128, 128
      %15 = vsyncadd [#allocation3], %s14
      %s17 = sshll.u32 [#allocation2], 4
      %s18 = int_to_ptr.vmem [resolvable:$true] %s17
      %20 = dma.hbm_to_vmem [thread:$0]  %s0, 128, %s18, [#allocation3]
    $region5: #{tpu_custom_call.1} parent=1 // pred_fallthru
      _
    // Predicated region
    $region6: #{tpu_custom_call.1} parent=1 // pred_check
      _
    $region7: #{tpu_custom_call.1} parent=1 // pred_check_branch
      %22 = sbr.rel (0) target = $region9
    $region8: #{tpu_custom_call.1} parent=1 // pred_region
      %s24 = ssub.s32 32, 32
      %25 = vsyncadd [#allocation6], %s24
      %s27 = sshll.u32 [#allocation5], 4
      %s28 = int_to_ptr.vmem [resolvable:$true] %s27
      %30 = dma.hbm_to_vmem [thread:$0]  %s1, 32, %s28, [#allocation6]
    $region9: #{tpu_custom_call.1} parent=1 // pred_fallthru
      _
    // Predicated region
    $region10: #{tpu_custom_call.1} parent=1 // pred_check
      _
    $region11: #{tpu_custom_call.1} parent=1 // pred_check_branch
      %32 = sbr.rel (0) target = $region13
    $region12: #{tpu_custom_call.1} parent=1 // pred_region
      %s34 = ssub.s32 16, 16
      %35 = vsyncadd [#allocation6], %s34
      %s37 = sshll.u32 [#allocation7], 4
      %s38 = int_to_ptr.vmem [resolvable:$true] %s37
      %40 = dma.hbm_to_vmem [thread:$0]  %s2, 16, %s38, [#allocation6]
    $region13: #{tpu_custom_call.1} parent=1 // pred_fallthru
      _
    // Predicated region
    $region14: #{tpu_custom_call.1} parent=1 // pred_check
      _
    $region15: #{tpu_custom_call.1} parent=1 // pred_check_branch
      %42 = sbr.rel (0) target = $region17
    $region16: #{tpu_custom_call.1} parent=1 // pred_region
      %43 = dma.done [#allocation3], 128
    $region17: #{tpu_custom_call.1} parent=1 // pred_fallthru
      _
    // Predicated region
    $region18: #{tpu_custom_call.1} parent=1 // pred_check
      _
    $region19: #{tpu_custom_call.1} parent=1 // pred_check_branch
      %45 = sbr.rel (0) target = $region21
    $region20: #{tpu_custom_call.1} parent=1 // pred_region
      %46 = dma.done [#allocation6], 32
    $region21: #{tpu_custom_call.1} parent=1 // pred_fallthru
      _
    // Predicated region
    $region22: #{tpu_custom_call.1} parent=1 // pred_check
      _
    $region23: #{tpu_custom_call.1} parent=1 // pred_check_branch
      %48 = sbr.rel (0) target = $region25
    $region24: #{tpu_custom_call.1} parent=1 // pred_region
      %49 = dma.done [#allocation6], 16
    $region25: #{tpu_custom_call.1} parent=1 // pred_fallthru
      _
    %v50 = vld [vmem:[#allocation2] sm:$0xff]
    %v51 = vld [vmem:[#allocation5] sm:$0x3]
    %v52 = vld [vmem:[#allocation7] sm:$0x1]
    %v54 = vlaneseq
    %v55 = vshrl.u32 %v54, 7
    %v56 = vsub.s32 0, %v55
    %v57 = vrot.slane %v52, %v56
    %vm59 = vcmask 261120
    %v61 = vsel %vm59, %v50, 0
    %v64 = vsel %vm59, %v51, 0
    %66 = vmatprep.subr.mxu0 0.0
    %67 = vmatpush1.xpose.msra.mxu0 %v64
    %68 = vmatprep.subr.mxu0 0.0
    %69 = vmatpush1.xpose.msra.mxu0 0.0
    %70 = vmatprep.subr.mxu0 0.0
    %71 = vmatpush1.xpose.msra.mxu0 0.0
    %72 = vmatprep.subr.mxu0 0.0
    %73 = vmatpush1.xpose.msra.mxu0 0.0
    %74 = vmatprep.subr.mxu0 0.0
    %75 = vmatpush1.xpose.msra.mxu0 0.0
    %76 = vmatprep.subr.mxu0 0.0
    %77 = vmatpush1.xpose.msra.mxu0 0.0
    %78 = vmatprep.subr.mxu0 0.0
    %79 = vmatpush1.xpose.msra.mxu0 0.0
    %80 = vmatprep.subr.mxu0 0.0
    %81 = vmatpush1.xpose.msra.mxu0 0.0
    %82 = vmatprep.subr.mxu0 0.0
    %83 = vmatpush1.xpose.msra.mxu0 0.0
    %84 = vmatprep.subr.mxu0 0.0
    %85 = vmatpush1.xpose.msra.mxu0 0.0
    %86 = vmatprep.subr.mxu0 0.0
    %87 = vmatpush1.xpose.msra.mxu0 0.0
    %88 = vmatprep.subr.mxu0 0.0
    %89 = vmatpush1.xpose.msra.mxu0 0.0
    %90 = vmatprep.subr.mxu0 0.0
    %91 = vmatpush1.xpose.msra.mxu0 0.0
    %92 = vmatprep.subr.mxu0 0.0
    %93 = vmatpush1.xpose.msra.mxu0 0.0
    %94 = vmatprep.subr.mxu0 0.0
    %95 = vmatpush1.xpose.msra.mxu0 0.0
    %96 = vmatprep.subr.mxu0 0.0
    %97 = vmatpush1.xpose.msra.mxu0 0.0
    %98 = vmatprep.subr.mxu0 0.0
    %99 = vmatpush1.xpose.msra.mxu0 0.0
    %100 = vmatprep.subr.mxu0 0.0
    %101 = vmatpush1.xpose.msra.mxu0 0.0
    %102 = vmatprep.subr.mxu0 0.0
    %103 = vmatpush1.xpose.msra.mxu0 0.0
    %104 = vmatprep.subr.mxu0 0.0
    %105 = vmatpush1.xpose.msra.mxu0 0.0
    %106 = vmatprep.subr.mxu0 0.0
    %107 = vmatpush1.xpose.msra.mxu0 0.0
    %108 = vmatprep.subr.mxu0 0.0
    %109 = vmatpush1.xpose.msra.mxu0 0.0
    %110 = vmatprep.subr.mxu0 0.0
    %111 = vmatpush1.xpose.msra.mxu0 0.0
    %112 = vmatprep.subr.mxu0 0.0
    %113 = vmatpush1.xpose.msra.mxu0 0.0
    %114 = vmatprep.subr.mxu0 0.0
    %115 = vmatpush1.xpose.msra.mxu0 0.0
    %116 = vmatprep.subr.mxu0 0.0
    %117 = vmatpush1.xpose.msra.mxu0 0.0
    %118 = vmatprep.subr.mxu0 0.0
    %119 = vmatpush1.xpose.msra.mxu0 0.0
    %120 = vmatprep.subr.mxu0 0.0
    %121 = vmatpush1.xpose.msra.mxu0 0.0
    %122 = vmatprep.subr.mxu0 0.0
    %123 = vmatpush1.xpose.msra.mxu0 0.0
    %124 = vmatprep.subr.mxu0 0.0
    %125 = vmatpush1.xpose.msra.mxu0 0.0
    %126 = vmatprep.subr.mxu0 0.0
    %127 = vmatpush1.xpose.msra.mxu0 0.0
    %128 = vmatprep.subr.mxu0 0.0
    %129 = vmatpush1.xpose.msra.mxu0 0.0
    %130 = vmatprep.mubr.f32.mxu0 0.0
    %131 = vmatmul.mubr.f32.gmra.mrb[0].mxu0 %v61
    %v132 = vpop.f32.mrb[0].mxu0
    %v133 = vadd.f32 %v57, %v132
    %v134 = vpop.f32.mrb[0].mxu0
    %135 = vdwg.mxu0
    %vm136 = vcmask 15360
    %137 = vst.msk [vmem:[#allocation8] sm:$0xff] %vm136, %v133
    // Predicated region
    $region26: #{tpu_custom_call.1} parent=1 // pred_check
      _
    $region27: #{tpu_custom_call.1} parent=1 // pred_check_branch
      %139 = sbr.rel (0) target = $region29
    $region28: #{tpu_custom_call.1} parent=1 // pred_region
      %s141 = ssub.s32 128, 128
      %142 = vsyncadd [#allocation4], %s141
      %s144 = sshll.u32 [#allocation8], 4
      %s145 = int_to_ptr.vmem [resolvable:$true] %s144
      %147 = dma.vmem_to_hbm [thread:$0]  %s145, 128, %s3, [#allocation4]
    $region29: #{tpu_custom_call.1} parent=1 // pred_fallthru
      _
    // Predicated region
    $region30: #{tpu_custom_call.1} parent=1 // pred_check
      _
    $region31: #{tpu_custom_call.1} parent=1 // pred_check_branch
      %149 = sbr.rel (0) target = $region33
    $region32: #{tpu_custom_call.1} parent=1 // pred_region
      %150 = dma.done [#allocation4], 128
    $region33: #{tpu_custom_call.1} parent=1 // pred_fallthru
      _
    %151 = vsyncpa [#allocation3], 1
    %152 = vsyncpa [#allocation6], 1
    %153 = vsyncpa [#allocation4], 1

</llo_original>
